<compile_context>
chip_gen: v5e
topology: v5e:2x2
jax: 0.10.0
libtpu: 0.0.40
codegen_flags: <defaults>
</compile_context>

<pallas_src>
import jax
import jax.numpy as jnp
from jax.experimental import pallas as pl
from jax.experimental.pallas import tpu as pltpu


def _channel_kernel(x_ref, w_ref, out_ref):
    # x_ref:   (bN, Cin, tile_hw)  bf16; channels on sublanes, HW on lanes
    # w_ref:   (Cout, Cin)         full (tiny) weight, resident across the grid
    # out_ref: (bN, Cout, tile_hw) model dtype (f32)
    w = w_ref[...]
    if x_ref.shape[0] == 1:
        out_ref[0] = jnp.dot(
            w, x_ref[0], preferred_element_type=jnp.float32
        ).astype(out_ref.dtype)
    else:
        # Batched matmul over the packed images; weight broadcast is a few KiB.
        wb = jnp.broadcast_to(w[None], (x_ref.shape[0],) + w.shape)
        out_ref[...] = jnp.einsum(
            "noc,nct->not", wb, x_ref[...], preferred_element_type=jnp.float32
        ).astype(out_ref.dtype)


def _round_up(x, m):
    return -(-x // m) * m


def _choose_tiling(N, Cin, Cout, HW, in_bytes, out_bytes, vmem_budget_bytes):
    """Pick (batch_block, hw_tile) so the double-buffered working set fits the
    VMEM budget, each grid step moves a large lane-dense slab, and the grid
    has >= 2 steps when possible (v7x megacore)."""
    hw_rounded = _round_up(HW, 128)
    bytes_per_pixel = Cin * in_bytes + Cout * out_bytes
    # Factor 2 = input/output double buffers managed by the Pallas pipeline.
    max_pixels = max(128, (vmem_budget_bytes // (2 * bytes_per_pixel)) // 128 * 128)
    tile_hw = min(hw_rounded, max_pixels)

    bn = 1
    if tile_hw >= hw_rounded:
        # Whole (rounded) image fits in one tile: pack images per grid step to
        # amortize the ~0.35 us per-step pipeline overhead.
        bn = max(1, min(N, max_pixels // hw_rounded))

    grid_n = -(-N // bn)
    grid_hw = -(-HW // tile_hw)
    if grid_n * grid_hw < 2 and N > 1:
        # A degenerate (1, 1) grid would leave one v7x TensorCore idle.
        bn = -(-N // 2)
        grid_n = -(-N // bn)
    return bn, tile_hw, grid_n, grid_hw


def channel_conv1x1(
    x_nchw,
    weight_oihw,
    *,
    compute_dtype=jnp.bfloat16,
    vmem_budget_bytes=12 * 1024 * 1024,
):
    """out = Conv2d_1x1(x; weight, bias=False); x NCHW, weight (Cout,Cin,1,1)."""
    N, Cin, H, W = x_nchw.shape
    Cout = weight_oihw.shape[0]
    out_dtype = x_nchw.dtype

    HW = H * W
    # Row-major reshape: free, no data movement.  HW becomes the lane axis.
    x_flat = x_nchw.reshape(N, Cin, HW).astype(compute_dtype)
    w2d = weight_oihw.reshape(Cout, Cin).astype(compute_dtype)

    in_bytes = jnp.dtype(compute_dtype).itemsize
    out_bytes = jnp.dtype(out_dtype).itemsize
    bn, tile_hw, grid_n, grid_hw = _choose_tiling(
        N, Cin, Cout, HW, in_bytes, out_bytes, vmem_budget_bytes
    )

    cost = pl.CostEstimate(
        flops=2 * N * HW * Cin * Cout,
        transcendentals=0,
        bytes_accessed=N * HW * (Cin * in_bytes + Cout * out_bytes)
        + Cout * Cin * in_bytes,
    )

    out_flat = pl.pallas_call(
        _channel_kernel,
        out_shape=jax.ShapeDtypeStruct((N, Cout, HW), out_dtype),
        grid=(grid_n, grid_hw),
        in_specs=[
            # (bn, Cin, tile_hw): packed images, channels on sublanes,
            # lane-dense HW tile.  Partial tail blocks are masked by Pallas.
            pl.BlockSpec((bn, Cin, tile_hw), lambda n, j: (n, 0, j)),
            # Full weight (a few KiB) stays resident (constant block index).
            pl.BlockSpec((Cout, Cin), lambda n, j: (0, 0)),
        ],
        out_specs=pl.BlockSpec((bn, Cout, tile_hw), lambda n, j: (n, 0, j)),
        compiler_params=pltpu.CompilerParams(
            dimension_semantics=("parallel", "parallel"),
            vmem_limit_bytes=32 * 1024 * 1024,  # safe headroom on v5e/v6e/v7x
        ),
        cost_estimate=cost,
    )(x_flat, w2d)

    return out_flat.reshape(N, Cout, H, W)


def channel_forward(x, weight_oihw):
    """Mirror of Channel.forward(x): return self.adjust(x)."""
    return channel_conv1x1(x, weight_oihw)


if __name__ == "__main__":
    key = jax.random.PRNGKey(0)
    kx, kw = jax.random.split(key, 2)

    # Channel(in_channels=32, out_channels=64) on a small NCHW input.
    N, Cin, Cout, H, W = 2, 32, 64, 16, 16
    x = jax.random.normal(kx, (N, Cin, H, W), dtype=jnp.float32)
    # Conv2d weight layout: (out_channels, in_channels, 1, 1), bias=False.
    weight = jax.random.normal(kw, (Cout, Cin, 1, 1), dtype=jnp.float32) * (
        1.0 / jnp.sqrt(float(Cin))
    )

    out = channel_forward(x, weight)
    out = jax.block_until_ready(out)
    assert out.shape == (N, Cout, H, W)

    # Tight check against a reference using the same bf16-quantized operands
    # (the kernel streams bf16 and accumulates in f32).
    x_q = x.astype(jnp.bfloat16).astype(jnp.float32)
    w_q = weight.reshape(Cout, Cin).astype(jnp.bfloat16).astype(jnp.float32)
    ref_q = jnp.einsum(
        "oi,nihw->nohw", w_q, x_q, precision=jax.lax.Precision.HIGHEST
    )
    assert jnp.allclose(out, ref_q, atol=2e-3, rtol=2e-3)

    # Loose sanity check vs the pure-f32 PyTorch-equivalent conv (bf16
    # streaming introduces ~0.4% per-operand quantization error).
    ref_f32 = jnp.einsum(
        "oi,nihw->nohw",
        weight.reshape(Cout, Cin),
        x,
        precision=jax.lax.Precision.HIGHEST,
    )
    assert jnp.allclose(out, ref_f32, atol=0.25, rtol=0.05)

    print("KERNEL_OK")
</pallas_src>

<mosaic_0001>
module attributes {stable_mosaic.version = 11 : i64} {
  func.func @_channel_kernel(%arg0: i32, %arg1: i32, %arg2: memref<1x32x256xbf16, #tpu.memory_space<vmem>>, %arg3: memref<64x32xbf16, #tpu.memory_space<vmem>>, %arg4: memref<1x64x256xf32, #tpu.memory_space<vmem>>) attributes {dimension_semantics = [#tpu.dimension_semantics<parallel>, #tpu.dimension_semantics<parallel>], iteration_bounds = array<i64: 2, 1>, scalar_prefetch = 0 : i64, scratch_operands = 0 : i64, tpu.core_type = #tpu.core_type<tc>, window_params = [{transform_indices = @transform_0, window_bounds = array<i64: 1, 32, 256>}, {pipeline_mode = #tpu.pipeline_mode<synchronous>, transform_indices = @transform_1, window_bounds = array<i64: 64, 32>}, {transform_indices = @transform_2, window_bounds = array<i64: 1, 64, 256>}]} {
    %c0 = arith.constant 0 : index
    %c0_0 = arith.constant 0 : index
    %0 = vector.load %arg3[%c0, %c0_0] : memref<64x32xbf16, #tpu.memory_space<vmem>>, vector<64x32xbf16>
    %c0_1 = arith.constant 0 : index
    %c0_2 = arith.constant 0 : index
    %c0_3 = arith.constant 0 : index
    %1 = vector.load %arg2[%c0_1, %c0_2, %c0_3] : memref<1x32x256xbf16, #tpu.memory_space<vmem>>, vector<1x32x256xbf16>
    %2 = vector.shape_cast %1 : vector<1x32x256xbf16> to vector<32x256xbf16>
    %cst = arith.constant dense<0.000000e+00> : vector<64x256xf32>
    %3 = tpu.matmul %0, %2, %cst {dimension_numbers = #tpu.dot_dimension_numbers<[1], [0], [0], [1], [0, 0, 1, 1], [], []>} : vector<64x32xbf16>, vector<32x256xbf16>, vector<64x256xf32> -> vector<64x256xf32>
    %c0_4 = arith.constant 0 : index
    %c0_5 = arith.constant 0 : index
    %c0_6 = arith.constant 0 : index
    %4 = vector.load %arg4[%c0_4, %c0_5, %c0_6] : memref<1x64x256xf32, #tpu.memory_space<vmem>>, vector<1x64x256xf32>
    %5 = vector.shape_cast %4 : vector<1x64x256xf32> to vector<64x256xf32>
    %6 = vector.shape_cast %3 : vector<64x256xf32> to vector<1x64x256xf32>
    tpu.vector_store %arg4[%c0_4, %c0_5, %c0_6], %6 {strides = array<i32>} : memref<1x64x256xf32, #tpu.memory_space<vmem>>, vector<1x64x256xf32>,
    return
  }
  func.func @transform_0(%arg0: i32, %arg1: i32) -> (i32, i32, i32) {
    %c0_i32 = arith.constant 0 : i32
    %c0_i32_0 = arith.constant 0 : i32
    return %arg0, %c0_i32, %arg1 : i32, i32, i32
  }
  func.func @transform_1(%arg0: i32, %arg1: i32) -> (i32, i32) {
    %c0_i32 = arith.constant 0 : i32
    %c0_i32_0 = arith.constant 0 : i32
    %c0_i32_1 = arith.constant 0 : i32
    return %c0_i32, %c0_i32_0 : i32, i32
  }
  func.func @transform_2(%arg0: i32, %arg1: i32) -> (i32, i32, i32) {
    %c0_i32 = arith.constant 0 : i32
    %c0_i32_0 = arith.constant 0 : i32
    return %arg0, %c0_i32, %arg1 : i32, i32, i32
  }
}

</mosaic_0001>

<llo_original>
// kernel: tpu_custom_call.1
$region0: #{tpu_custom_call.1}
  #allocation0 [shape = 'u32[]', space=smem, size = 0x4, offset = 0x4, fixed_abs, tag = 'smem constant byte address 0x4 - core index']
  #allocation1 [shape = 'u32[72,128]{1,0:T(1,128)}', space=vmem, size = 0x9000, scoped, tag = 'internal scratch']
  %s0 = inlined_call_operand.hbm [shape: bf16[2,32,256], index: 0, kind: input, shape index: {}]
  %s1 = inlined_call_operand.vmem [shape: bf16[64,32], index: 1, kind: input, shape index: {}]
  %s2 = inlined_call_operand.hbm [shape: f32[2,64,256], index: 2, kind: output, shape index: {}]
  %s3 = sld [smem:[#allocation0]]
  $region45: #{tpu_custom_call.1} parent=0
    _
  %s5 = ssub.s32 1, %s3
  %s6 = scalar_select 0, %s5, %s3
  $region1: #{tpu_custom_call.1} parent=0
    #allocation2 [shape = 'u8[32768]{0}', space=vmem, size = 0x8000, scoped, tag = 'input window, operand 0']
    #allocation3 [shape = 's32[2]{0}', space=sflag, size = 0x8, scoped, tag = 'scoped memory for tpu_custom_call.1']
    #allocation4 [shape = 's32[2]{0}', space=sflag, size = 0x8, scoped, tag = 'scoped memory for tpu_custom_call.1']
    #allocation5 [shape = 'u8[131072]{0}', space=vmem, size = 0x20000, scoped, tag = 'output window, operand 0']
    %7 = vsyncpa [#allocation3], 0
    %s8 = scalar_lea.sflag [#allocation3], 1
    %9 = vsyncpa %s8, 0
    %10 = vsyncpa [#allocation4], 0
    %s11 = scalar_lea.sflag [#allocation4], 1
    %12 = vsyncpa %s11, 0
    loop: start=0, step=1, limit=4
    $region2: #{tpu_custom_call.1} parent=1 // loop_pre_header
      _
    $region3: #{tpu_custom_call.1} parent=1 // loop_header
      %s14 = sphi 0, %s18
      %p15 = scmp.ge.s32.totalorder %s14, 4
      %s21 = sphi 0, %s33
      %s22 = sphi 0, %s29
      %s23 = sphi 0, %s21
      %s24 = sphi 0, %s22
      %s25 = sphi 0, %s23
      %s26 = sphi 0, %s24
      %s38 = sphi 0, %s40
      %s41 = sphi 0, %s38
      %s42 = sphi 0, %s41
      %s58 = sphi 0, %s42
      %s62 = sphi 0, %s62
      %s64 = sphi 0, %s62
      %s65 = sphi 0, %s64
      %s79 = sphi 0, %s65
      %s87 = sphi 0, %s89
      %s90 = sphi 0, %s87
      %s91 = sphi 0, %s90
      %s107 = sphi 0, %s91
    $region4: #{tpu_custom_call.1} parent=1 // loop_header_branch
      %17 = sbr.rel (%p15) target = $region8
    $region5: #{tpu_custom_call.1} parent=1 // loop_body
      %s19 = ssub.s32 %s14, 1
      %s20 = ssub.s32 %s14, 2
      %s27 = sadd.s32 1, %s22
      %p28 = scmp.ge.s32.totalorder %s27, 1
      %s29 = scalar_select %p28, 0, %s27
      %s30 = sadd.s32 1, %s21
      %s31 = scalar_select %p28, %s30, %s21
      %p32 = scmp.ge.s32.totalorder %s31, 2
      %s33 = scalar_select %p32, 0, %s31
      %s34 = ssub.s32 %s21, %s33
      %s35 = ssub.s32 %s22, %s29
      %s36 = sor.u32 %s34, %s35
      %p37 = scmp.eq.s32.totalorder %s36, 0
      %s39 = sadd.s32 %s38, 1
      %s40 = scalar_select %p37, %s38, %s39
      %p43 = pneg %p37
      %p44 = scmp.eq.s32.totalorder %s14, 1
      %p45 = por %p43, %p44
      %p46 = scmp.ne.s32.totalorder %s38, %s41
      %p47 = scmp.eq.s32.totalorder %s14, 0
      %p48 = por %p46, %p47
      %p49 = scmp.ne.s32.totalorder %s38, %s41
      %p50 = scmp.eq.s32.totalorder %s19, 1
      %p51 = por %p49, %p50
      %p52 = scmp.ne.s32.totalorder %s41, %s42
      %p53 = scmp.eq.s32.totalorder %s19, 0
      %p54 = por %p52, %p53
      %p55 = scmp.ne.s32.totalorder %s41, %s42
      %p56 = scmp.eq.s32.totalorder %s20, 1
      %p57 = por %p55, %p56
      %p59 = scmp.ne.s32.totalorder %s42, %s58
      %p60 = scmp.eq.s32.totalorder %s20, 0
      %p61 = por %p59, %p60
      %s63 = sadd.s32 %s62, 1
      %p66 = scmp.eq.s32.totalorder %s14, 1
      %p67 = scmp.ne.s32.totalorder %s62, %s64
      %p68 = scmp.eq.s32.totalorder %s14, 0
      %p69 = por %p67, %p68
      %p70 = scmp.ne.s32.totalorder %s62, %s64
      %p71 = scmp.eq.s32.totalorder %s19, 1
      %p72 = por %p70, %p71
      %p73 = scmp.ne.s32.totalorder %s64, %s65
      %p74 = scmp.eq.s32.totalorder %s19, 0
      %p75 = por %p73, %p74
      %p76 = scmp.ne.s32.totalorder %s64, %s65
      %p77 = scmp.eq.s32.totalorder %s20, 1
      %p78 = por %p76, %p77
      %p80 = scmp.ne.s32.totalorder %s65, %s79
      %p81 = scmp.eq.s32.totalorder %s20, 0
      %p82 = por %p80, %p81
      %s83 = ssub.s32 %s21, %s33
      %s84 = ssub.s32 %s22, %s29
      %s85 = sor.u32 %s83, %s84
      %p86 = scmp.eq.s32.totalorder %s85, 0
      %s88 = sadd.s32 %s87, 1
      %s89 = scalar_select %p86, %s87, %s88
      %p92 = pneg %p86
      %p93 = scmp.eq.s32.totalorder %s14, 1
      %p94 = por %p92, %p93
      %p95 = scmp.ne.s32.totalorder %s87, %s90
      %p96 = scmp.eq.s32.totalorder %s14, 0
      %p97 = por %p95, %p96
      %p98 = scmp.ne.s32.totalorder %s87, %s90
      %p99 = scmp.eq.s32.totalorder %s19, 1
      %p100 = por %p98, %p99
      %p101 = scmp.ne.s32.totalorder %s90, %s91
      %p102 = scmp.eq.s32.totalorder %s19, 0
      %p103 = por %p101, %p102
      %p104 = scmp.ne.s32.totalorder %s90, %s91
      %p105 = scmp.eq.s32.totalorder %s20, 1
      %p106 = por %p104, %p105
      %p108 = scmp.ne.s32.totalorder %s91, %s107
      %p109 = scmp.eq.s32.totalorder %s20, 0
      %p110 = por %p108, %p109
      %p111 = scmp.le.s32.totalorder 1, %s14
      %p112 = scmp.lt.s32.totalorder %s14, 3
      %p113 = pnand %p111, %p112
      %p114 = pneg %p113
      // Predicated region
      $region9: #{tpu_custom_call.1} parent=5 // pred_check
        _
      $region10: #{tpu_custom_call.1} parent=5 // pred_check_branch
        %116 = sbr.rel (%p113) target = $region12
      $region11: #{tpu_custom_call.1} parent=5 // pred_region
        %s117 = ssub.s32 %s14, 1
        // Predicated region
        $region13: #{tpu_custom_call.1} parent=11 // pred_check
          %p118 = pneg %p75
        $region14: #{tpu_custom_call.1} parent=11 // pred_check_branch
          %120 = sbr.rel (%p118) target = $region16
        $region15: #{tpu_custom_call.1} parent=11 // pred_region
          _
        $region16: #{tpu_custom_call.1} parent=11 // pred_fallthru
          _
      $region12: #{tpu_custom_call.1} parent=5 // pred_fallthru
        _
      %p121 = scmp.lt.s32.totalorder %s14, 2
      // Predicated region
      $region17: #{tpu_custom_call.1} parent=5 // pred_check
        %p122 = pneg %p121
      $region18: #{tpu_custom_call.1} parent=5 // pred_check_branch
        %124 = sbr.rel (%p122) target = $region20
      $region19: #{tpu_custom_call.1} parent=5 // pred_region
        // Predicated region
        $region21: #{tpu_custom_call.1} parent=19 // pred_check
          %p125 = pneg %p48
        $region22: #{tpu_custom_call.1} parent=19 // pred_check_branch
          %127 = sbr.rel (%p125) target = $region24
        $region23: #{tpu_custom_call.1} parent=19 // pred_region
          %s128 = sand.u32 %s38, 1
          %s129 = scalar_lea.sflag [#allocation3], %s128
          %s130 = sand.u32 %s38, 1
          %s131 = smul.addr %s130, 32
          %s132 = scalar_lea.vmem [#allocation2], %s131
          %s133 = smul.u32 2, %s22
          %135 = vsyncadd %s129, 0
          %s136 = smul.addr %s21, 8
          %s137 = sadd.s32 %s133, %s136
          %s138 = smul.addr %s137, 4
          %s139 = scalar_lea.hbm %s0, %s138
          %s140 = sshll.u32 %s139, 4
          %s141 = int_to_ptr.hbm [resolvable:$true] %s140
          %s142 = sshll.u32 %s132, 4
          %s143 = int_to_ptr.vmem [resolvable:$true] %s142
          %148 = dma.hbm_to_vmem [thread:$0]  %s141, 512, %s143, %s129, 128, 128, 8
        $region24: #{tpu_custom_call.1} parent=19 // pred_fallthru
          _
      $region20: #{tpu_custom_call.1} parent=5 // pred_fallthru
        _
      %p149 = scmp.le.s32.totalorder 1, %s14
      %p150 = scmp.lt.s32.totalorder %s14, 3
      %p151 = pnand %p149, %p150
      %p152 = pneg %p151
      // Predicated region
      $region25: #{tpu_custom_call.1} parent=5 // pred_check
        _
      $region26: #{tpu_custom_call.1} parent=5 // pred_check_branch
        %154 = sbr.rel (%p151) target = $region28
      $region27: #{tpu_custom_call.1} parent=5 // pred_region
        %s155 = ssub.s32 %s14, 1
        %s156 = sand.u32 %s41, 1
        %s157 = scalar_lea.sflag [#allocation3], %s156
        %s158 = sand.u32 %s41, 1
        %s159 = smul.addr %s158, 32
        %s160 = scalar_lea.vmem [#allocation2], %s159
        // Predicated region
        $region29: #{tpu_custom_call.1} parent=27 // pred_check
          %p161 = pneg %p54
        $region30: #{tpu_custom_call.1} parent=27 // pred_check_branch
          %163 = sbr.rel (%p161) target = $region32
        $region31: #{tpu_custom_call.1} parent=27 // pred_region
          %165 = dma.done %s157, 512
        $region32: #{tpu_custom_call.1} parent=27 // pred_fallthru
          _
        %s166 = sand.u32 %s41, 1
        %s167 = scalar_lea.sflag [#allocation3], %s166
        %s168 = sand.u32 %s41, 1
        %s169 = smul.addr %s168, 32
        %s170 = scalar_lea.vmem [#allocation2], %s169
        %p171 = pneg %p54
        %p172 = pneg %p51
        %p173 = pneg %p75
        %p174 = pneg %p72
        %p175 = pneg %p103
        %p176 = pneg %p100
        %s177 = sand.u32 %s90, 1
        %s178 = scalar_lea.sflag [#allocation4], %s177
        %s179 = sand.u32 %s90, 1
        %s180 = smul.addr %s179, 128
        %s181 = scalar_lea.vmem [#allocation5], %s180
        %s182 = smul.u32 2, %s24
        %s183 = smul.u32 2, %s24
        %v185 = vld [vmem:[%s1] sm:$0xf]
        %v186 = vld [vmem:[%s1 + $0x4] sm:$0xf]
        %v187 = vld [vmem:[%s1 + $0x8] sm:$0xf]
        %v188 = vld [vmem:[%s1 + $0xc] sm:$0xf]
        %v189 = vld [vmem:[%s1 + $0x10] sm:$0xf]
        %v190 = vld [vmem:[%s1 + $0x14] sm:$0xf]
        %v191 = vld [vmem:[%s1 + $0x18] sm:$0xf]
        %v192 = vld [vmem:[%s1 + $0x1c] sm:$0xf]
        %v193 = vld [vmem:[%s160] sm:$0xff]
        %v194 = vld [vmem:[%s160 + $0x8] sm:$0xff]
        %v195 = vld [vmem:[%s160 + $0x10] sm:$0xff]
        %v196 = vld [vmem:[%s160 + $0x18] sm:$0xff]
        %v205 = vunpack.c.l.b16 %v185
        %v206 = vunpack.c.l.b16 %v186
        %v207 = vunpack.c.l.b16 %v187
        %v208 = vunpack.c.l.b16 %v188
        %v209 = vunpack.c.l.b16 %v189
        %v210 = vunpack.c.l.b16 %v190
        %v211 = vunpack.c.l.b16 %v191
        %v212 = vunpack.c.l.b16 %v192
        %v213 = vpack.c.b16 %v206, %v205
        %v214 = vpack.c.b16 %v208, %v207
        %v215 = vpack.c.b16 %v210, %v209
        %v216 = vpack.c.b16 %v212, %v211
        %v221 = vunpack.c.l.b16 %v193
        %v222 = vunpack.c.h.b16 %v193
        %v223 = vunpack.c.l.b16 %v194
        %v224 = vunpack.c.h.b16 %v194
        %v225 = vunpack.c.l.b16 %v195
        %v226 = vunpack.c.h.b16 %v195
        %v227 = vunpack.c.l.b16 %v196
        %v228 = vunpack.c.h.b16 %v196
        %v229 = vpack.c.b16 %v223, %v221
        %v230 = vpack.c.b16 %v224, %v222
        %v231 = vpack.c.b16 %v227, %v225
        %v232 = vpack.c.b16 %v228, %v226
        %vm237 = vcmask 261120
        %v239 = vsel %vm237, %v213, 0
        %v242 = vsel %vm237, %v214, 0
        %v245 = vsel %vm237, %v215, 0
        %v248 = vsel %vm237, %v216, 0
        %250 = vmatpush.bf16.msra.mxu0 0
        %251 = vmatpush.bf16.msra.mxu0 0
        %252 = vmatpush.bf16.msra.mxu0 0
        %253 = vmatpush.bf16.msra.mxu0 0
        %254 = vmatpush.bf16.msra.mxu0 0
        %255 = vmatpush.bf16.msra.mxu0 0
        %256 = vmatpush.bf16.msra.mxu0 %v231
        %257 = vmatpush.bf16.msra.mxu0 %v229
        %258 = vmatmul.bf16.gmra.mxu0 %v239
        %v259 = vpop.f32.mrf.mxu0
        %v260 = vadd.f32 0.0, %v259
        %v261 = vpop.f32.mrf.mxu0
        %v262 = vadd.f32 0.0, %v261
        %263 = vmatmul.bf16.gmra.mxu0 %v242
        %v264 = vpop.f32.mrf.mxu0
        %v265 = vadd.f32 0.0, %v264
        %v266 = vpop.f32.mrf.mxu0
        %v267 = vadd.f32 0.0, %v266
        %268 = vmatmul.bf16.gmra.mxu0 %v245
        %v269 = vpop.f32.mrf.mxu0
        %v270 = vadd.f32 0.0, %v269
        %v271 = vpop.f32.mrf.mxu0
        %v272 = vadd.f32 0.0, %v271
        %273 = vmatmul.bf16.gmra.mxu0 %v248
        %v274 = vpop.f32.mrf.mxu0
        %v275 = vadd.f32 0.0, %v274
        %v276 = vpop.f32.mrf.mxu0
        %v277 = vadd.f32 0.0, %v276
        %278 = vdwg.mxu0
        %279 = vmatpush.bf16.msra.mxu0 0
        %280 = vmatpush.bf16.msra.mxu0 0
        %281 = vmatpush.bf16.msra.mxu0 0
        %282 = vmatpush.bf16.msra.mxu0 0
        %283 = vmatpush.bf16.msra.mxu0 0
        %284 = vmatpush.bf16.msra.mxu0 0
        %285 = vmatpush.bf16.msra.mxu0 %v232
        %286 = vmatpush.bf16.msra.mxu0 %v230
        %287 = vmatmul.bf16.gmra.mxu0 %v239
        %v288 = vpop.f32.mrf.mxu0
        %v289 = vadd.f32 0.0, %v288
        %v290 = vpop.f32.mrf.mxu0
        %v291 = vadd.f32 0.0, %v290
        %292 = vmatmul.bf16.gmra.mxu0 %v242
        %v293 = vpop.f32.mrf.mxu0
        %v294 = vadd.f32 0.0, %v293
        %v295 = vpop.f32.mrf.mxu0
        %v296 = vadd.f32 0.0, %v295
        %297 = vmatmul.bf16.gmra.mxu0 %v245
        %v298 = vpop.f32.mrf.mxu0
        %v299 = vadd.f32 0.0, %v298
        %v300 = vpop.f32.mrf.mxu0
        %v301 = vadd.f32 0.0, %v300
        %302 = vmatmul.bf16.gmra.mxu0 %v248
        %v303 = vpop.f32.mrf.mxu0
        %v304 = vadd.f32 0.0, %v303
        %v305 = vpop.f32.mrf.mxu0
        %v306 = vadd.f32 0.0, %v305
        %307 = vdwg.mxu0
        %308 = vst [vmem:[%s181] sm:$0xff] %v260
        %309 = vst [vmem:[%s181 + $0x8] sm:$0xff] %v289
        %310 = vst [vmem:[%s181 + $0x10] sm:$0xff] %v262
        %311 = vst [vmem:[%s181 + $0x18] sm:$0xff] %v291
        %312 = vst [vmem:[%s181 + $0x20] sm:$0xff] %v265
        %313 = vst [vmem:[%s181 + $0x28] sm:$0xff] %v294
        %314 = vst [vmem:[%s181 + $0x30] sm:$0xff] %v267
        %315 = vst [vmem:[%s181 + $0x38] sm:$0xff] %v296
        %316 = vst [vmem:[%s181 + $0x40] sm:$0xff] %v270
        %317 = vst [vmem:[%s181 + $0x48] sm:$0xff] %v299
        %318 = vst [vmem:[%s181 + $0x50] sm:$0xff] %v272
        %319 = vst [vmem:[%s181 + $0x58] sm:$0xff] %v301
        %320 = vst [vmem:[%s181 + $0x60] sm:$0xff] %v275
        %321 = vst [vmem:[%s181 + $0x68] sm:$0xff] %v304
        %322 = vst [vmem:[%s181 + $0x70] sm:$0xff] %v277
        %323 = vst [vmem:[%s181 + $0x78] sm:$0xff] %v306
        %s324 = sand.u32 %s90, 1
        %s325 = scalar_lea.sflag [#allocation4], %s324
        %s326 = sand.u32 %s90, 1
        %s327 = smul.addr %s326, 128
        %s328 = scalar_lea.vmem [#allocation5], %s327
        // Predicated region
        $region33: #{tpu_custom_call.1} parent=27 // pred_check
          %p329 = pneg %p100
        $region34: #{tpu_custom_call.1} parent=27 // pred_check_branch
          %331 = sbr.rel (%p329) target = $region36
        $region35: #{tpu_custom_call.1} parent=27 // pred_region
          %s332 = smul.u32 2, %s24
          %334 = vsyncadd %s325, 0
          %s335 = smul.addr %s23, 16
          %s336 = sadd.s32 %s332, %s335
          %s337 = smul.addr %s336, 8
          %s338 = scalar_lea.hbm %s2, %s337
          %s339 = sshll.u32 %s328, 4
          %s340 = int_to_ptr.vmem [resolvable:$true] %s339
          %s341 = sshll.u32 %s338, 4
          %s342 = int_to_ptr.hbm [resolvable:$true] %s341
          %347 = dma.vmem_to_hbm [thread:$0]  %s340, 2048, %s342, %s325, 256, 256, 16
        $region36: #{tpu_custom_call.1} parent=27 // pred_fallthru
          _
      $region28: #{tpu_custom_call.1} parent=5 // pred_fallthru
        _
      %p348 = scmp.le.s32.totalorder 2, %s14
      // Predicated region
      $region37: #{tpu_custom_call.1} parent=5 // pred_check
        %p349 = pneg %p348
      $region38: #{tpu_custom_call.1} parent=5 // pred_check_branch
        %351 = sbr.rel (%p349) target = $region40
      $region39: #{tpu_custom_call.1} parent=5 // pred_region
        %s352 = ssub.s32 %s14, 2
        // Predicated region
        $region41: #{tpu_custom_call.1} parent=39 // pred_check
          %p353 = pneg %p106
        $region42: #{tpu_custom_call.1} parent=39 // pred_check_branch
          %355 = sbr.rel (%p353) target = $region44
        $region43: #{tpu_custom_call.1} parent=39 // pred_region
          %s356 = sand.u32 %s91, 1
          %s357 = scalar_lea.sflag [#allocation4], %s356
          %s358 = sand.u32 %s91, 1
          %s359 = smul.addr %s358, 128
          %s360 = scalar_lea.vmem [#allocation5], %s359
          %362 = dma.done %s357, 2048
        $region44: #{tpu_custom_call.1} parent=39 // pred_fallthru
          _
      $region40: #{tpu_custom_call.1} parent=5 // pred_fallthru
        _
    $region6: #{tpu_custom_call.1} parent=1 // loop_footer
      %s18 = sadd.s32 1, %s14
    $region7: #{tpu_custom_call.1} parent=1 // loop_footer_branch
      %13 = sbr.rel target = $region3
    $region8: #{tpu_custom_call.1} parent=1 // loop_exit
      _
    %363 = vsyncpa [#allocation3], 1
    %s364 = scalar_lea.sflag [#allocation3], 1
    %365 = vsyncpa %s364, 1
    %366 = vsyncpa [#allocation4], 1
    %s367 = scalar_lea.sflag [#allocation4], 1
    %368 = vsyncpa %s367, 1

</llo_original>
